<compile_context>
chip_gen: v5e
topology: v5e:2x2
jax: 0.10.0
libtpu: 0.0.40
codegen_flags: <defaults>
</compile_context>

<pallas_src>
import functools

import jax
import jax.numpy as jnp
from jax.experimental import pallas as pl
from jax.experimental.pallas import tpu as pltpu

EPS_GUMBEL = 1e-20   # matches torch sample_gumbel eps


def _round_up(x, m):
    return (x + m - 1) // m * m


def _get_user_kernel(xt_ref, params_ref, ut_ref, pt_ref, *,
                     inv_tau, one_user, n_z, hidden, n_topic, r_w2, c_bias):
    xt = xt_ref[...]                                             # [n_z, tb]

    # Packed params: single resident VMEM buffer (aligned slices, no copies).
    w1 = params_ref[pl.ds(0, hidden), pl.ds(0, n_z)]             # [H, n_z]
    b1 = params_ref[pl.ds(0, hidden), pl.ds(c_bias, 1)]          # [H, 1]
    w2 = params_ref[pl.ds(r_w2, n_topic), pl.ds(0, hidden)]      # [T, H]
    b2 = params_ref[pl.ds(r_w2, n_topic), pl.ds(c_bias, 1)]      # [T, 1]

    # ---- linear1 + tanh (lane-dense: batch on the 128-lane axis) ----------
    ht = jnp.tanh(jnp.dot(w1, xt, preferred_element_type=jnp.float32) + b1)

    # ---- linear2 ------------------------------------------------------------
    logits = jnp.dot(w2, ht, preferred_element_type=jnp.float32) + b2  # [T, tb]

    if one_user:
        # gumbel_softmax(log_softmax(logits)/..., tau): the per-batch-column
        # log-sum-exp of the inner log-softmax is constant along the topic
        # axis and cancels inside the outer softmax, so only the gumbel shift
        # and the 1/tau scale remain (same guard-free semantics as before).
        u = ut_ref[...]                                          # [T, tb]
        g = -jnp.log(-jnp.log(u + EPS_GUMBEL) + EPS_GUMBEL)
        y = (logits + g) * inv_tau
    else:
        y = logits

    # Softmax over the topic axis (= sublane axis here; reductions hit XLU).
    y = y - jnp.max(y, axis=0, keepdims=True)
    ey = jnp.exp(y)
    inv_den = pl.reciprocal(jnp.sum(ey, axis=0, keepdims=True), approx=False)
    pt_ref[...] = (ey * inv_den).astype(pt_ref.dtype)


def pack_params(params):
    """Pack (W1, b1, W2, b2) (torch nn.Linear layouts) into one 2D f32 buffer.

    Layout (8-aligned row offsets, 128-aligned bias column):
        rows [0, hidden)           cols [0, n_z)     : W1  [hidden, n_z]
        rows [0, hidden)           col  c_bias       : b1  (stored as a column)
        rows [r_w2, r_w2+n_topic)  cols [0, hidden)  : W2  [n_topic, hidden]
        rows [r_w2, r_w2+n_topic)  col  c_bias       : b2  (stored as a column)
    """
    w1, b1, w2, b2 = params
    hidden, n_z = w1.shape
    n_topic = w2.shape[0]
    r_w2 = _round_up(hidden, 8)
    n_rows = _round_up(r_w2 + n_topic, 8)
    c_bias = _round_up(max(n_z, hidden), 128)
    n_cols = c_bias + 128
    packed = jnp.zeros((n_rows, n_cols), jnp.float32)
    packed = packed.at[:hidden, :n_z].set(w1.astype(jnp.float32))
    packed = packed.at[:hidden, c_bias].set(b1.reshape(hidden).astype(jnp.float32))
    packed = packed.at[r_w2:r_w2 + n_topic, :hidden].set(w2.astype(jnp.float32))
    packed = packed.at[r_w2:r_w2 + n_topic, c_bias].set(
        b2.reshape(n_topic).astype(jnp.float32))
    return packed, (r_w2, c_bias)


def _choose_tb(B, block_b):
    """Batch-block width along the lane axis.

    Multiple of 128 (or the full B when B <= 128), capped at ~B/2 so the
    "parallel" batch grid keeps >= 2 steps for the two v7x TensorCores.
    """
    if B <= 128:
        return B
    bb = max(128, _round_up(block_b, 128))
    half = _round_up(pl.cdiv(B, 2), 128)
    return min(bb, half)


def get_user_forward(latent_context, params, uniform_noise, *, tau, one_user,
                     block_b=1024):
    """Returns (selected_user [B] int32, p_user [B, n_topic] f32)."""
    B, n_z = latent_context.shape
    hidden = params[0].shape[0]
    n_topic = params[2].shape[0]

    packed, (r_w2, c_bias) = pack_params(params)
    n_rows, n_cols = packed.shape

    # Lane-dense transposed layout (batch on the 128-lane axis).  Callers that
    # can supply x^T / consume p^T directly should do so and drop this plumbing.
    xt = latent_context.astype(jnp.float32).T            # [n_z, B]
    ut = uniform_noise.astype(jnp.float32).T             # [n_topic, B]

    tb = _choose_tb(B, block_b)
    grid = (pl.cdiv(B, tb),)

    kernel = functools.partial(
        _get_user_kernel, inv_tau=1.0 / tau, one_user=one_user, n_z=n_z,
        hidden=hidden, n_topic=n_topic, r_w2=r_w2, c_bias=c_bias)

    pt = pl.pallas_call(
        kernel,
        out_shape=jax.ShapeDtypeStruct((n_topic, B), jnp.float32),
        grid_spec=pltpu.PrefetchScalarGridSpec(
            num_scalar_prefetch=0,
            grid=grid,
            in_specs=[
                pl.BlockSpec((n_z, tb), lambda i: (0, i)),         # x^T (blocked)
                pl.BlockSpec((n_rows, n_cols), lambda i: (0, 0)),  # params (resident)
                pl.BlockSpec((n_topic, tb), lambda i: (0, i)),     # noise^T
            ],
            out_specs=pl.BlockSpec((n_topic, tb), lambda i: (0, i)),
        ),
        compiler_params=pltpu.CompilerParams(
            dimension_semantics=("parallel",)),
    )(xt, packed, ut)

    p_user = pt.T                                         # [B, n_topic]
    # argmax in the wrapper: avoids a lane-width-1 masked store in the kernel.
    selected_user = jnp.argmax(p_user, axis=-1).astype(jnp.int32)
    return selected_user, p_user


def init_params(key, n_z, n_topic_num):
    """Deterministic synthetic parameters in torch nn.Linear layouts."""
    h = n_z // 2
    k1, k2, k3, k4 = jax.random.split(key, 4)
    w1 = jax.random.normal(k1, (h, n_z), jnp.float32) * 0.1      # linear1.weight
    b1 = jax.random.normal(k2, (h,), jnp.float32) * 0.1          # linear1.bias
    w2 = jax.random.normal(k3, (n_topic_num, h), jnp.float32) * 0.1
    b2 = jax.random.normal(k4, (n_topic_num,), jnp.float32) * 0.1
    return (w1, b1, w2, b2)


def _reference(latent_context, params, uniform_noise, *, tau, one_user):
    """Pure-JAX reference mirroring the torch module (incl. the +1e-10 guard)."""
    w1, b1, w2, b2 = params
    h = jnp.tanh(latent_context @ w1.T + b1)
    p = jax.nn.softmax(h @ w2.T + b2, axis=-1)
    if one_user:
        lp = jnp.log(p + 1e-10)
        g = -jnp.log(-jnp.log(uniform_noise + EPS_GUMBEL) + EPS_GUMBEL)
        p = jax.nn.softmax((lp + g) / tau, axis=-1)
    sel = jnp.argmax(p, axis=-1).astype(jnp.int32)
    return sel, p


if __name__ == "__main__":
    # Shapes consistent with the module: n_z=32 -> hidden=16, 16 topics.
    N_Z, N_TOPIC = 32, 16
    TAU = 0.5

    key = jax.random.PRNGKey(0)
    k_p, k_small, k_big, k_soft = jax.random.split(key, 4)
    params = init_params(k_p, N_Z, N_TOPIC)

    def run_case(k, B, one_user, block_b):
        kx, ku = jax.random.split(k)
        x = jax.random.normal(kx, (B, N_Z), jnp.float32)
        u = jax.random.uniform(ku, (B, N_TOPIC), jnp.float32)   # [0, 1)
        sel, p = get_user_forward(x, params, u, tau=TAU, one_user=one_user,
                                  block_b=block_b)
        jax.block_until_ready((sel, p))
        assert sel.shape == (B,) and sel.dtype == jnp.int32
        assert p.shape == (B, N_TOPIC)
        assert bool(jnp.all(jnp.abs(jnp.sum(p, axis=-1) - 1.0) < 1e-4))
        sel_ref, p_ref = _reference(x, params, u, tau=TAU, one_user=one_user)
        assert bool(jnp.allclose(p, p_ref, atol=1e-5, rtol=1e-4))
        assert bool(jnp.array_equal(sel, sel_ref))

    # Small single-block case (B == lane extent of the one block).
    run_case(k_small, B=8, one_user=True, block_b=1024)
    # Multi-block case with a partial last block (grid=2, padded lanes masked).
    run_case(k_big, B=260, one_user=True, block_b=256)
    # Plain softmax branch (config.one_user = False).
    run_case(k_soft, B=8, one_user=False, block_b=1024)

    # TODO(synk): is_test branch (random / fixed topic-id selection) is pure
    # host-side integer sampling with no tensor hot path, left out of the kernel.
    print("KERNEL_OK")
</pallas_src>

<mosaic_0001>
module attributes {stable_mosaic.version = 11 : i64} {
  func.func @_get_user_kernel(%arg0: i32, %arg1: memref<32x8xf32, #tpu.memory_space<vmem>>, %arg2: memref<32x256xf32, #tpu.memory_space<vmem>>, %arg3: memref<16x8xf32, #tpu.memory_space<vmem>>, %arg4: memref<16x8xf32, #tpu.memory_space<vmem>>) attributes {dimension_semantics = [#tpu.dimension_semantics<parallel>], iteration_bounds = array<i64: 1>, scalar_prefetch = 0 : i64, scratch_operands = 0 : i64, tpu.core_type = #tpu.core_type<tc>, window_params = [{transform_indices = @transform_0, window_bounds = array<i64: 32, 8>}, {pipeline_mode = #tpu.pipeline_mode<synchronous>, transform_indices = @transform_1, window_bounds = array<i64: 32, 256>}, {transform_indices = @transform_2, window_bounds = array<i64: 16, 8>}, {transform_indices = @transform_3, window_bounds = array<i64: 16, 8>}]} {
    %c0 = arith.constant 0 : index
    %c0_0 = arith.constant 0 : index
    %0 = vector.load %arg1[%c0, %c0_0] : memref<32x8xf32, #tpu.memory_space<vmem>>, vector<32x8xf32>
    %c0_1 = arith.constant 0 : index
    %c0_2 = arith.constant 0 : index
    %1 = vector.load %arg2[%c0_1, %c0_2] : memref<32x256xf32, #tpu.memory_space<vmem>>, vector<16x32xf32>
    %c0_3 = arith.constant 0 : index
    %c128 = arith.constant 128 : index
    %2 = vector.load %arg2[%c0_3, %c128] : memref<32x256xf32, #tpu.memory_space<vmem>>, vector<16x1xf32>
    %c16 = arith.constant 16 : index
    %c0_4 = arith.constant 0 : index
    %3 = vector.load %arg2[%c16, %c0_4] : memref<32x256xf32, #tpu.memory_space<vmem>>, vector<16x16xf32>
    %c16_5 = arith.constant 16 : index
    %c128_6 = arith.constant 128 : index
    %4 = vector.load %arg2[%c16_5, %c128_6] : memref<32x256xf32, #tpu.memory_space<vmem>>, vector<16x1xf32>
    %cst = arith.constant dense<0.000000e+00> : vector<16x8xf32>
    %5 = tpu.matmul %1, %0, %cst {dimension_numbers = #tpu.dot_dimension_numbers<[1], [0], [0], [1], [0, 0, 1, 1], [], []>} : vector<16x32xf32>, vector<32x8xf32>, vector<16x8xf32> -> vector<16x8xf32>
    %6 = vector.broadcast %2 : vector<16x1xf32> to vector<16x8xf32>
    %7 = arith.addf %5, %6 : vector<16x8xf32>
    %8 = math.tanh %7 : vector<16x8xf32>
    %cst_7 = arith.constant dense<0.000000e+00> : vector<16x8xf32>
    %9 = tpu.matmul %3, %8, %cst_7 {dimension_numbers = #tpu.dot_dimension_numbers<[1], [0], [0], [1], [0, 0, 1, 1], [], []>} : vector<16x16xf32>, vector<16x8xf32>, vector<16x8xf32> -> vector<16x8xf32>
    %10 = vector.broadcast %4 : vector<16x1xf32> to vector<16x8xf32>
    %11 = arith.addf %9, %10 : vector<16x8xf32>
    %c0_8 = arith.constant 0 : index
    %c0_9 = arith.constant 0 : index
    %12 = vector.load %arg3[%c0_8, %c0_9] : memref<16x8xf32, #tpu.memory_space<vmem>>, vector<16x8xf32>
    %cst_10 = arith.constant 9.99999968E-21 : f32
    %13 = vector.broadcast %cst_10 : f32 to vector<16x8xf32>
    %14 = arith.addf %12, %13 : vector<16x8xf32>
    %15 = math.log %14 : vector<16x8xf32>
    %cst_11 = arith.constant 0.000000e+00 : f32
    %16 = vector.broadcast %cst_11 : f32 to vector<16x8xf32>
    %17 = arith.subf %16, %15 : vector<16x8xf32>
    %cst_12 = arith.constant 9.99999968E-21 : f32
    %18 = vector.broadcast %cst_12 : f32 to vector<16x8xf32>
    %19 = arith.addf %17, %18 : vector<16x8xf32>
    %20 = math.log %19 : vector<16x8xf32>
    %cst_13 = arith.constant 0.000000e+00 : f32
    %21 = vector.broadcast %cst_13 : f32 to vector<16x8xf32>
    %22 = arith.subf %21, %20 : vector<16x8xf32>
    %23 = arith.addf %11, %22 : vector<16x8xf32>
    %cst_14 = arith.constant 2.000000e+00 : f32
    %24 = vector.broadcast %cst_14 : f32 to vector<16x8xf32>
    %25 = arith.mulf %23, %24 : vector<16x8xf32>
    %cst_15 = arith.constant dense<0xFF800000> : vector<8xf32>
    %26 = vector.multi_reduction <maximumf>, %25, %cst_15 [0] : vector<16x8xf32> to vector<8xf32>
    %27 = vector.shape_cast %26 : vector<8xf32> to vector<1x8xf32>
    %28 = vector.broadcast %27 : vector<1x8xf32> to vector<16x8xf32>
    %29 = arith.subf %25, %28 : vector<16x8xf32>
    %30 = math.exp %29 : vector<16x8xf32>
    %cst_16 = arith.constant dense<0.000000e+00> : vector<8xf32>
    %31 = vector.multi_reduction <add>, %30, %cst_16 [0] : vector<16x8xf32> to vector<8xf32>
    %32 = vector.shape_cast %31 : vector<8xf32> to vector<1x8xf32>
    %33 = tpu.reciprocal %32 : vector<1x8xf32> -> vector<1x8xf32>
    %34 = vector.broadcast %33 : vector<1x8xf32> to vector<16x8xf32>
    %35 = arith.mulf %30, %34 : vector<16x8xf32>
    %c0_17 = arith.constant 0 : index
    %c0_18 = arith.constant 0 : index
    %36 = vector.load %arg4[%c0_17, %c0_18] : memref<16x8xf32, #tpu.memory_space<vmem>>, vector<16x8xf32>
    tpu.vector_store %arg4[%c0_17, %c0_18], %35 {strides = array<i32>} : memref<16x8xf32, #tpu.memory_space<vmem>>, vector<16x8xf32>,
    return
  }
  func.func @transform_0(%arg0: i32) -> (i32, i32) {
    %c0_i32 = arith.constant 0 : i32
    %c0_i32_0 = arith.constant 0 : i32
    return %c0_i32, %arg0 : i32, i32
  }
  func.func @transform_1(%arg0: i32) -> (i32, i32) {
    %c0_i32 = arith.constant 0 : i32
    %c0_i32_0 = arith.constant 0 : i32
    %c0_i32_1 = arith.constant 0 : i32
    return %c0_i32, %c0_i32_0 : i32, i32
  }
  func.func @transform_2(%arg0: i32) -> (i32, i32) {
    %c0_i32 = arith.constant 0 : i32
    %c0_i32_0 = arith.constant 0 : i32
    return %c0_i32, %arg0 : i32, i32
  }
  func.func @transform_3(%arg0: i32) -> (i32, i32) {
    %c0_i32 = arith.constant 0 : i32
    %c0_i32_0 = arith.constant 0 : i32
    return %c0_i32, %arg0 : i32, i32
  }
}

</mosaic_0001>

<llo_original>
// kernel: tpu_custom_call.1
$region0: #{tpu_custom_call.1}
  #allocation0 [shape = 'u32[]', space=smem, size = 0x4, offset = 0x4, fixed_abs, tag = 'smem constant byte address 0x4 - core index']
  #allocation1 [shape = 'u32[72,128]{1,0:T(1,128)}', space=vmem, size = 0x9000, scoped, tag = 'internal scratch']
  %s0 = inlined_call_operand.vmem [shape: f32[32,8], index: 0, kind: input, shape index: {}]
  %s1 = inlined_call_operand.hbm [shape: f32[32,256], index: 1, kind: input, shape index: {}]
  %s2 = inlined_call_operand.vmem [shape: f32[16,8], index: 2, kind: input, shape index: {}]
  %s3 = inlined_call_operand.vmem [shape: f32[16,8], index: 3, kind: output, shape index: {}]
  %s4 = sld [smem:[#allocation0]]
  $region26: #{tpu_custom_call.1} parent=0
    _
  %s6 = ssub.s32 1, %s4
  %s7 = scalar_select 0, %s6, %s4
  $region1: #{tpu_custom_call.1} parent=0
    #allocation2 [shape = 'u8[32768]{0}', space=vmem, size = 0x8000, scoped, tag = 'input window, operand 1, single buffered']
    #allocation3 [shape = 's32[1]{0}', space=sflag, size = 0x4, scoped, tag = 'scoped memory for tpu_custom_call.1']
    %8 = vsyncpa [#allocation3], 0
    // Predicated region
    $region2: #{tpu_custom_call.1} parent=1 // pred_check
      _
    $region3: #{tpu_custom_call.1} parent=1 // pred_check_branch
      %10 = sbr.rel (0) target = $region5
    $region4: #{tpu_custom_call.1} parent=1 // pred_region
      _
    $region5: #{tpu_custom_call.1} parent=1 // pred_fallthru
      _
    // Predicated region
    $region6: #{tpu_custom_call.1} parent=1 // pred_check
      _
    $region7: #{tpu_custom_call.1} parent=1 // pred_check_branch
      %12 = sbr.rel (0) target = $region9
    $region8: #{tpu_custom_call.1} parent=1 // pred_region
      %14 = vsyncadd [#allocation3], 0
      %s15 = sshll.u32 %s1, 4
      %s16 = int_to_ptr.hbm [resolvable:$true] %s15
      %s17 = sshll.u32 [#allocation2], 4
      %s18 = int_to_ptr.vmem [resolvable:$true] %s17
      %23 = dma.hbm_to_vmem [thread:$0]  %s16, 1024, %s18, [#allocation3], 256, 256, 16
    $region9: #{tpu_custom_call.1} parent=1 // pred_fallthru
      _
    // Predicated region
    $region10: #{tpu_custom_call.1} parent=1 // pred_check
      _
    $region11: #{tpu_custom_call.1} parent=1 // pred_check_branch
      %25 = sbr.rel (0) target = $region13
    $region12: #{tpu_custom_call.1} parent=1 // pred_region
      _
    $region13: #{tpu_custom_call.1} parent=1 // pred_fallthru
      _
    // Predicated region
    $region14: #{tpu_custom_call.1} parent=1 // pred_check
      _
    $region15: #{tpu_custom_call.1} parent=1 // pred_check_branch
      %27 = sbr.rel (0) target = $region17
    $region16: #{tpu_custom_call.1} parent=1 // pred_region
      %29 = dma.done [#allocation3], 1024
    $region17: #{tpu_custom_call.1} parent=1 // pred_fallthru
      _
    %v30 = vld [vmem:[%s0] sm:$0xff]
    %v31 = vld [vmem:[%s0 + $0x8] sm:$0xff]
    %v32 = vld [vmem:[%s0 + $0x10] sm:$0xff]
    %v33 = vld [vmem:[%s0 + $0x18] sm:$0xff]
    %v34 = vld [vmem:[#allocation2] sm:$0xff]
    %v35 = vld [vmem:[#allocation2 + $0x10] sm:$0xff]
    %v36 = vld [vmem:[#allocation2 + $0x8] sm:$0xff]
    %v37 = vld [vmem:[#allocation2 + $0x18] sm:$0xff]
    %v38 = vld [vmem:[#allocation2 + $0x20] sm:$0xff]
    %v39 = vld [vmem:[#allocation2 + $0x30] sm:$0xff]
    %v40 = vld [vmem:[#allocation2 + $0x28] sm:$0xff]
    %v41 = vld [vmem:[#allocation2 + $0x38] sm:$0xff]
    %43 = vset.pattern.permute.xlu0 0
    %44 = vperm.xlu0 %43, %v36
    %v45 = vpop.permute.xlu0 %44
    %48 = vset.pattern.permute.xlu0 0
    %49 = vperm.xlu0 %48, %v37
    %v50 = vpop.permute.xlu0 %49
    %vm52 = vcmask 261120
    %v54 = vsel %vm52, %v34, 0
    %v57 = vsel %vm52, %v35, 0
    %59 = vmatpush.msra.mxu0 0.0
    %60 = vmatpush.msra.mxu0 0.0
    %61 = vmatpush.msra.mxu0 0.0
    %62 = vmatpush.msra.mxu0 0.0
    %63 = vmatpush.msra.mxu0 0.0
    %64 = vmatpush.msra.mxu0 0.0
    %65 = vmatpush.msra.mxu0 0.0
    %66 = vmatpush.msra.mxu0 0.0
    %67 = vmatpush.msra.mxu0 0.0
    %68 = vmatpush.msra.mxu0 0.0
    %69 = vmatpush.msra.mxu0 0.0
    %70 = vmatpush.msra.mxu0 0.0
    %71 = vmatpush.msra.mxu0 %v33
    %72 = vmatpush.msra.mxu0 %v32
    %73 = vmatpush.msra.mxu0 %v31
    %74 = vmatpush.msra.mxu0 %v30
    %75 = vmatmul.f32.gmra.mxu0 %v54
    %v76 = vpop.f32.mrf.mxu0
    %v77 = vadd.f32 %v45, %v76
    %78 = vmatmul.f32.gmra.mxu0 %v57
    %v79 = vpop.f32.mrf.mxu0
    %v80 = vadd.f32 %v50, %v79
    %81 = vdwg.mxu0
    %v82 = vtanh.pop %v77
    %v83 = vtanh.pop %v80
    %85 = vset.pattern.permute.xlu0 0
    %86 = vperm.xlu0 %85, %v40
    %v87 = vpop.permute.xlu0 %86
    %90 = vset.pattern.permute.xlu0 0
    %91 = vperm.xlu0 %90, %v41
    %v92 = vpop.permute.xlu0 %91
    %vm94 = vcmask 130048
    %v96 = vsel %vm94, %v38, 0
    %v99 = vsel %vm94, %v39, 0
    %101 = vmatpush.msra.mxu0 0.0
    %102 = vmatpush.msra.mxu0 0.0
    %103 = vmatpush.msra.mxu0 0.0
    %104 = vmatpush.msra.mxu0 0.0
    %105 = vmatpush.msra.mxu0 0.0
    %106 = vmatpush.msra.mxu0 0.0
    %107 = vmatpush.msra.mxu0 0.0
    %108 = vmatpush.msra.mxu0 0.0
    %109 = vmatpush.msra.mxu0 0.0
    %110 = vmatpush.msra.mxu0 0.0
    %111 = vmatpush.msra.mxu0 0.0
    %112 = vmatpush.msra.mxu0 0.0
    %113 = vmatpush.msra.mxu0 0.0
    %114 = vmatpush.msra.mxu0 0.0
    %115 = vmatpush.msra.mxu0 %v83
    %116 = vmatpush.msra.mxu0 %v82
    %117 = vmatmul.f32.gmra.mxu0 %v96
    %v118 = vpop.f32.mrf.mxu0
    %v119 = vadd.f32 %v87, %v118
    %120 = vmatmul.f32.gmra.mxu0 %v99
    %v121 = vpop.f32.mrf.mxu0
    %v122 = vadd.f32 %v92, %v121
    %123 = vdwg.mxu0
    %v124 = vld [vmem:[%s2] sm:$0xff]
    %v125 = vld [vmem:[%s2 + $0x8] sm:$0xff]
    %v126 = vadd.f32 %v124, 1e-20
    %v127 = vadd.f32 %v125, 1e-20
    %v128 = vlog2.pop %v126
    %v129 = vmul.f32 %v128, 0.6931472
    %v130 = vlog2.pop %v127
    %v131 = vmul.f32 %v130, 0.6931472
    %v132 = vsub.f32 0.0, %v129
    %v133 = vsub.f32 0.0, %v131
    %v134 = vadd.f32 %v132, 1e-20
    %v135 = vadd.f32 %v133, 1e-20
    %v136 = vlog2.pop %v134
    %v137 = vmul.f32 %v136, 0.6931472
    %v138 = vlog2.pop %v135
    %v139 = vmul.f32 %v138, 0.6931472
    %v140 = vsub.f32 0.0, %v137
    %v141 = vsub.f32 0.0, %v139
    %v142 = vadd.f32 %v119, %v140
    %v143 = vadd.f32 %v122, %v141
    %v144 = vmul.f32 %v142, 2.0
    %v145 = vmul.f32 %v143, 2.0
    %vm146 = vcmask 64512
    %v147 = vsel %vm146, %v144, -inf
    %v148 = vsel %vm146, %v145, -inf
    %v149 = vmax.f32 %v147, %v148
    %v150 = vrot.slane %v149, 4
    %v151 = vmax.f32 %v149, %v150
    %v152 = vrot.slane %v151, 2
    %v153 = vmax.f32 %v151, %v152
    %v154 = vrot.slane %v153, 1
    %v155 = vmax.f32 %v153, %v154
    %v156 = vsub.f32 %v144, %v155
    %v157 = vsub.f32 %v145, %v155
    %v158 = vmul.f32 %v156, 1.442695
    %v159 = vpow.pop %v158
    %v160 = vmul.f32 %v157, 1.442695
    %v161 = vpow.pop %v160
    %v162 = vsel %vm146, %v159, 0.0
    %v163 = vsel %vm146, %v161, 0.0
    %v164 = vadd.f32 %v162, %v163
    %v165 = vrot.slane %v164, 4
    %v166 = vadd.f32 %v164, %v165
    %v167 = vrot.slane %v166, 2
    %v168 = vadd.f32 %v166, %v167
    %v169 = vrot.slane %v168, 1
    %v170 = vadd.f32 %v168, %v169
    %v171 = vrcp.pop %v170
    %v172 = vmul.f32 %v170, %v171
    %v173 = vsub.f32 1.0, %v172
    %v174 = vmul.f32 %v171, %v173
    %v175 = vadd.f32 %v171, %v174
    %vm176 = vweird.f32 %v170
    %vm177 = vweird.f32 %v171
    %vm178 = vmor %vm176, %vm177
    %v179 = vsel %vm178, %v171, %v175
    %v180 = vand.u32 2147483647, %v170
    %vm181 = vcmp.eq.f32.partialorder %v180, 8.507059e+37
    %v182 = vand.u32 %v170, 2147483648
    %v183 = vor.u32 1.1754944e-38, %v182
    %v184 = vsel %vm181, %v183, %v179
    %v185 = vmul.f32 %v159, %v184
    %v186 = vmul.f32 %v161, %v184
    %187 = vst.msk [vmem:[%s3] sm:$0xff] %vm146, %v185
    %188 = vst.msk [vmem:[%s3 + $0x8] sm:$0xff] %vm146, %v186
    // Predicated region
    $region18: #{tpu_custom_call.1} parent=1 // pred_check
      _
    $region19: #{tpu_custom_call.1} parent=1 // pred_check_branch
      %190 = sbr.rel (0) target = $region21
    $region20: #{tpu_custom_call.1} parent=1 // pred_region
      _
    $region21: #{tpu_custom_call.1} parent=1 // pred_fallthru
      _
    // Predicated region
    $region22: #{tpu_custom_call.1} parent=1 // pred_check
      _
    $region23: #{tpu_custom_call.1} parent=1 // pred_check_branch
      %192 = sbr.rel (0) target = $region25
    $region24: #{tpu_custom_call.1} parent=1 // pred_region
      _
    $region25: #{tpu_custom_call.1} parent=1 // pred_fallthru
      _
    %193 = vsyncpa [#allocation3], 1

</llo_original>
